<compile_context>
chip_gen: v7x
topology: tpu7x:2x2x1
jax: 0.10.0
libtpu: 0.0.40
codegen_flags: <defaults>
</compile_context>

<pallas_src>
import jax
import jax.numpy as jnp
from jax.experimental import pallas as pl
from jax.experimental.pallas import tpu as pltpu

LANES = 128
BLOCK_ROWS_MAX = 512          # (512, 128) f32 = 256 KiB per input buffer
MIN_ROWS_FOR_CORE_SPLIT = 512  # only split across cores when each half has >= 256 rows


def _round_up(a, m):
    return -(-a // m) * m


def _wce_kernel(x_ref, t_ref, pos_o, tlog_o, log_o, t_acc, tl_acc, l_acc):
    j = pl.program_id(1)

    @pl.when(j == 0)
    def _():
        t_acc[...] = jnp.zeros_like(t_acc)
        tl_acc[...] = jnp.zeros_like(tl_acc)
        l_acc[...] = jnp.zeros_like(l_acc)

    x = x_ref[...].astype(jnp.float32)
    t = t_ref[...].astype(jnp.float32)

    # One log per element: with binary targets only the selected branch survives.
    # Padding (x = 0, t = 0) gives log(1 + 1e-12) == 0 in f32 -> zero contribution.
    L = jnp.log(jnp.where(t > 0.5, x, 1.0 - x) + 1e-12)

    t_acc[...] = t_acc[...] + t        # partial sum of targets (positive count)
    tl_acc[...] = tl_acc[...] + t * L  # partial sum of t * log-term
    l_acc[...] = l_acc[...] + L        # partial sum of log-term

    @pl.when(j == pl.num_programs(1) - 1)
    def _():
        pos_o[...] = jnp.sum(t_acc[...]).reshape(1, 1)
        tlog_o[...] = jnp.sum(tl_acc[...]).reshape(1, 1)
        log_o[...] = jnp.sum(l_acc[...]).reshape(1, 1)


def _flatten_native(a):
    a = a.reshape(-1)
    if a.dtype not in (jnp.dtype(jnp.float32), jnp.dtype(jnp.bfloat16)):
        a = a.astype(jnp.float32)
    return a


def weighted_ce(inputs, targets, reduction: str = "sum"):
    assert inputs.shape == targets.shape
    n = inputs.size
    assert n > 0, "empty input (denominator would be zero, as in the PyTorch reference)"

    if reduction not in ("sum", "mean", "none"):
        raise ValueError(f"Invalid Value for arg 'reduction': '{reduction}'")
    if reduction == "none":
        # TODO(synk): 'none' (per-element loss map) needs a second, elementwise-output pass
        # after the global sums; only 'sum' / 'mean' are supported by this reduction kernel.
        raise NotImplementedError("reduction='none' not implemented in the Pallas kernel")

    x = _flatten_native(inputs)
    t = _flatten_native(targets)

    # Row count: multiple of 32 (valid sublane tiling for f32/bf16), then pick core split,
    # block height, and pad rows up to a multiple of splits * block_rows.
    rows = _round_up(-(-n // LANES), 32)
    splits = 2 if rows >= MIN_ROWS_FOR_CORE_SPLIT else 1
    block_rows = min(BLOCK_ROWS_MAX, _round_up(-(-rows // splits), 32))
    rows = _round_up(rows, splits * block_rows)
    tiles_per_split = rows // (splits * block_rows)

    pad = rows * LANES - n
    if pad:
        # zero padding contributes exactly nothing (see kernel comment)
        x = jnp.pad(x, (0, pad))
        t = jnp.pad(t, (0, pad))
    x = x.reshape(rows, LANES)
    t = t.reshape(rows, LANES)

    in_map = lambda c, j: (c * tiles_per_split + j, 0)
    out_map = lambda c, j: (c, 0)
    scalar_spec = pl.BlockSpec((1, 1), out_map)
    scalar_shape = jax.ShapeDtypeStruct((splits, 1), jnp.float32)

    pos_s, tlog_s, log_s = pl.pallas_call(
        _wce_kernel,
        out_shape=(scalar_shape, scalar_shape, scalar_shape),
        grid_spec=pltpu.PrefetchScalarGridSpec(
            num_scalar_prefetch=0,
            grid=(splits, tiles_per_split),
            in_specs=[pl.BlockSpec((block_rows, LANES), in_map),
                      pl.BlockSpec((block_rows, LANES), in_map)],
            out_specs=(scalar_spec, scalar_spec, scalar_spec),
            scratch_shapes=[pltpu.VMEM((block_rows, LANES), jnp.float32),
                            pltpu.VMEM((block_rows, LANES), jnp.float32),
                            pltpu.VMEM((block_rows, LANES), jnp.float32)],
        ),
        compiler_params=pltpu.CompilerParams(
            dimension_semantics=("parallel", "arbitrary")),
    )(x, t)

    n_f = jnp.float32(n)
    pos = jnp.sum(pos_s)                 # sum(t)
    s_pos_log = jnp.sum(tlog_s)          # sum over positives of log(x + eps)
    s_neg_log = jnp.sum(log_s) - s_pos_log  # sum over negatives of log(1 - x + eps)
    neg = n_f - pos                      # == sum(1 - t)
    # loss is linear in the global class weights -> apply them once at the end
    loss_sum = -((neg / n_f) * s_pos_log + (pos / n_f) * s_neg_log)

    if reduction == "sum":
        return loss_sum
    return loss_sum / n_f                # 'mean'


def _reference(inputs, targets, reduction="sum"):
    inputs = inputs.astype(jnp.float32)
    targets = targets.astype(jnp.float32)
    pos_num = jnp.sum(targets)
    neg_num = jnp.sum(1.0 - targets)
    loss = -(targets * (neg_num / (pos_num + neg_num)) * jnp.log(inputs + 1e-12)
             + (1.0 - targets) * (pos_num / (pos_num + neg_num)) * jnp.log(1.0 - inputs + 1e-12))
    if reduction == "sum":
        return jnp.sum(loss)
    elif reduction == "mean":
        return jnp.mean(loss)
    return loss


if __name__ == "__main__":
    key = jax.random.PRNGKey(0)

    # Primary: NCHW-style prediction / binary target maps (module's intended use).
    k1, k2, k3, k4 = jax.random.split(key, 4)
    shape = (2, 4, 16, 16)
    inputs = jax.random.uniform(k1, shape, jnp.float32, minval=0.01, maxval=0.99)
    targets = (jax.random.uniform(k2, shape, jnp.float32) > 0.5).astype(jnp.float32)

    loss_sum = jax.block_until_ready(weighted_ce(inputs, targets, reduction="sum"))
    loss_mean = jax.block_until_ready(weighted_ce(inputs, targets, reduction="mean"))
    ref_sum = _reference(inputs, targets, reduction="sum")
    ref_mean = _reference(inputs, targets, reduction="mean")
    if not jnp.allclose(loss_sum, ref_sum, rtol=1e-4, atol=1e-4):
        raise AssertionError(f"sum mismatch: kernel={loss_sum} ref={ref_sum}")
    if not jnp.allclose(loss_mean, ref_mean, rtol=1e-4, atol=1e-4):
        raise AssertionError(f"mean mismatch: kernel={loss_mean} ref={ref_mean}")

    # Secondary: larger map to exercise the core-split axis + multi-tile accumulation.
    shape2 = (2, 8, 128, 128)
    inputs2 = jax.random.uniform(k3, shape2, jnp.float32, minval=0.01, maxval=0.99)
    targets2 = (jax.random.uniform(k4, shape2, jnp.float32) > 0.7).astype(jnp.float32)
    loss2 = jax.block_until_ready(weighted_ce(inputs2, targets2, reduction="sum"))
    ref2 = _reference(inputs2, targets2, reduction="sum")
    if not jnp.allclose(loss2, ref2, rtol=1e-4, atol=1e-4):
        raise AssertionError(f"multi-tile mismatch: kernel={loss2} ref={ref2}")

    print("KERNEL_OK")
</pallas_src>

<mosaic_0001>
module attributes {stable_mosaic.version = 11 : i64} {
  func.func @_wce_kernel(%arg0: i32, %arg1: i32, %arg2: memref<32x128xf32, #tpu.memory_space<vmem>>, %arg3: memref<32x128xf32, #tpu.memory_space<vmem>>, %arg4: memref<1x1xf32, #tpu.memory_space<vmem>>, %arg5: memref<1x1xf32, #tpu.memory_space<vmem>>, %arg6: memref<1x1xf32, #tpu.memory_space<vmem>>, %arg7: memref<32x128xf32, #tpu.memory_space<vmem>>, %arg8: memref<32x128xf32, #tpu.memory_space<vmem>>, %arg9: memref<32x128xf32, #tpu.memory_space<vmem>>) attributes {dimension_semantics = [#tpu.dimension_semantics<parallel>, #tpu.dimension_semantics<arbitrary>], iteration_bounds = array<i64: 1, 1>, scalar_prefetch = 0 : i64, scratch_operands = 3 : i64, tpu.core_type = #tpu.core_type<tc>, window_params = [{transform_indices = @transform_0, window_bounds = array<i64: 32, 128>}, {transform_indices = @transform_1, window_bounds = array<i64: 32, 128>}, {transform_indices = @transform_2, window_bounds = array<i64: 1, 1>}, {transform_indices = @transform_3, window_bounds = array<i64: 1, 1>}, {transform_indices = @transform_4, window_bounds = array<i64: 1, 1>}]} {
    %c0_i32 = arith.constant 0 : i32
    %0 = arith.cmpi eq, %arg1, %c0_i32 : i32
    %1 = arith.extui %0 : i1 to i32
    %c0_i32_0 = arith.constant 0 : i32
    %2 = arith.cmpi ne, %1, %c0_i32_0 : i32
    scf.if %2 {
      %cst_20 = arith.constant 0.000000e+00 : f32
      %26 = vector.broadcast %cst_20 : f32 to vector<32x128xf32>
      %c0_21 = arith.constant 0 : index
      %c0_22 = arith.constant 0 : index
      %27 = vector.load %arg7[%c0_21, %c0_22] : memref<32x128xf32, #tpu.memory_space<vmem>>, vector<32x128xf32>
      tpu.vector_store %arg7[%c0_21, %c0_22], %26 {strides = array<i32>} : memref<32x128xf32, #tpu.memory_space<vmem>>, vector<32x128xf32>,
      %cst_23 = arith.constant 0.000000e+00 : f32
      %28 = vector.broadcast %cst_23 : f32 to vector<32x128xf32>
      %c0_24 = arith.constant 0 : index
      %c0_25 = arith.constant 0 : index
      %29 = vector.load %arg8[%c0_24, %c0_25] : memref<32x128xf32, #tpu.memory_space<vmem>>, vector<32x128xf32>
      tpu.vector_store %arg8[%c0_24, %c0_25], %28 {strides = array<i32>} : memref<32x128xf32, #tpu.memory_space<vmem>>, vector<32x128xf32>,
      %cst_26 = arith.constant 0.000000e+00 : f32
      %30 = vector.broadcast %cst_26 : f32 to vector<32x128xf32>
      %c0_27 = arith.constant 0 : index
      %c0_28 = arith.constant 0 : index
      %31 = vector.load %arg9[%c0_27, %c0_28] : memref<32x128xf32, #tpu.memory_space<vmem>>, vector<32x128xf32>
      tpu.vector_store %arg9[%c0_27, %c0_28], %30 {strides = array<i32>} : memref<32x128xf32, #tpu.memory_space<vmem>>, vector<32x128xf32>,
    } else {
    }
    %c0 = arith.constant 0 : index
    %c0_1 = arith.constant 0 : index
    %3 = vector.load %arg2[%c0, %c0_1] : memref<32x128xf32, #tpu.memory_space<vmem>>, vector<32x128xf32>
    %c0_2 = arith.constant 0 : index
    %c0_3 = arith.constant 0 : index
    %4 = vector.load %arg3[%c0_2, %c0_3] : memref<32x128xf32, #tpu.memory_space<vmem>>, vector<32x128xf32>
    %cst = arith.constant 5.000000e-01 : f32
    %5 = vector.broadcast %cst : f32 to vector<32x128xf32>
    %6 = arith.cmpf ogt, %4, %5 : vector<32x128xf32>
    %cst_4 = arith.constant 1.000000e+00 : f32
    %7 = vector.broadcast %cst_4 : f32 to vector<32x128xf32>
    %8 = arith.subf %7, %3 : vector<32x128xf32>
    %9 = arith.select %6, %3, %8 : vector<32x128xi1>, vector<32x128xf32>
    %cst_5 = arith.constant 9.99999996E-13 : f32
    %10 = vector.broadcast %cst_5 : f32 to vector<32x128xf32>
    %11 = arith.addf %9, %10 : vector<32x128xf32>
    %12 = math.log %11 : vector<32x128xf32>
    %c0_6 = arith.constant 0 : index
    %c0_7 = arith.constant 0 : index
    %13 = vector.load %arg7[%c0_6, %c0_7] : memref<32x128xf32, #tpu.memory_space<vmem>>, vector<32x128xf32>
    %14 = arith.addf %13, %4 : vector<32x128xf32>
    %c0_8 = arith.constant 0 : index
    %c0_9 = arith.constant 0 : index
    %15 = vector.load %arg7[%c0_8, %c0_9] : memref<32x128xf32, #tpu.memory_space<vmem>>, vector<32x128xf32>
    tpu.vector_store %arg7[%c0_8, %c0_9], %14 {strides = array<i32>} : memref<32x128xf32, #tpu.memory_space<vmem>>, vector<32x128xf32>,
    %c0_10 = arith.constant 0 : index
    %c0_11 = arith.constant 0 : index
    %16 = vector.load %arg8[%c0_10, %c0_11] : memref<32x128xf32, #tpu.memory_space<vmem>>, vector<32x128xf32>
    %17 = arith.mulf %4, %12 : vector<32x128xf32>
    %18 = arith.addf %16, %17 : vector<32x128xf32>
    %c0_12 = arith.constant 0 : index
    %c0_13 = arith.constant 0 : index
    %19 = vector.load %arg8[%c0_12, %c0_13] : memref<32x128xf32, #tpu.memory_space<vmem>>, vector<32x128xf32>
    tpu.vector_store %arg8[%c0_12, %c0_13], %18 {strides = array<i32>} : memref<32x128xf32, #tpu.memory_space<vmem>>, vector<32x128xf32>,
    %c0_14 = arith.constant 0 : index
    %c0_15 = arith.constant 0 : index
    %20 = vector.load %arg9[%c0_14, %c0_15] : memref<32x128xf32, #tpu.memory_space<vmem>>, vector<32x128xf32>
    %21 = arith.addf %20, %12 : vector<32x128xf32>
    %c0_16 = arith.constant 0 : index
    %c0_17 = arith.constant 0 : index
    %22 = vector.load %arg9[%c0_16, %c0_17] : memref<32x128xf32, #tpu.memory_space<vmem>>, vector<32x128xf32>
    tpu.vector_store %arg9[%c0_16, %c0_17], %21 {strides = array<i32>} : memref<32x128xf32, #tpu.memory_space<vmem>>, vector<32x128xf32>,
    %c0_i32_18 = arith.constant 0 : i32
    %23 = arith.cmpi eq, %arg1, %c0_i32_18 : i32
    %24 = arith.extui %23 : i1 to i32
    %c0_i32_19 = arith.constant 0 : i32
    %25 = arith.cmpi ne, %24, %c0_i32_19 : i32
    scf.if %25 {
      %c0_20 = arith.constant 0 : index
      %c0_21 = arith.constant 0 : index
      %26 = vector.load %arg7[%c0_20, %c0_21] : memref<32x128xf32, #tpu.memory_space<vmem>>, vector<32x128xf32>
      %27 = vector.shape_cast %26 : vector<32x128xf32> to vector<1x32x128xf32>
      %cst_22 = arith.constant dense<0.000000e+00> : vector<1xf32>
      %28 = vector.multi_reduction <add>, %27, %cst_22 [1, 2] : vector<1x32x128xf32> to vector<1xf32>
      %29 = vector.shape_cast %28 : vector<1xf32> to vector<1x1x1xf32>
      %30 = vector.extract %29[0, 0, 0] : f32 from vector<1x1x1xf32>
      %31 = vector.broadcast %30 : f32 to vector<1x1xf32>
      %c0_23 = arith.constant 0 : index
      %c0_24 = arith.constant 0 : index
      %32 = vector.load %arg4[%c0_23, %c0_24] : memref<1x1xf32, #tpu.memory_space<vmem>>, vector<1x1xf32>
      tpu.vector_store %arg4[%c0_23, %c0_24], %31 {strides = array<i32>} : memref<1x1xf32, #tpu.memory_space<vmem>>, vector<1x1xf32>,
      %c0_25 = arith.constant 0 : index
      %c0_26 = arith.constant 0 : index
      %33 = vector.load %arg8[%c0_25, %c0_26] : memref<32x128xf32, #tpu.memory_space<vmem>>, vector<32x128xf32>
      %34 = vector.shape_cast %33 : vector<32x128xf32> to vector<1x32x128xf32>
      %cst_27 = arith.constant dense<0.000000e+00> : vector<1xf32>
      %35 = vector.multi_reduction <add>, %34, %cst_27 [1, 2] : vector<1x32x128xf32> to vector<1xf32>
      %36 = vector.shape_cast %35 : vector<1xf32> to vector<1x1x1xf32>
      %37 = vector.extract %36[0, 0, 0] : f32 from vector<1x1x1xf32>
      %38 = vector.broadcast %37 : f32 to vector<1x1xf32>
      %c0_28 = arith.constant 0 : index
      %c0_29 = arith.constant 0 : index
      %39 = vector.load %arg5[%c0_28, %c0_29] : memref<1x1xf32, #tpu.memory_space<vmem>>, vector<1x1xf32>
      tpu.vector_store %arg5[%c0_28, %c0_29], %38 {strides = array<i32>} : memref<1x1xf32, #tpu.memory_space<vmem>>, vector<1x1xf32>,
      %c0_30 = arith.constant 0 : index
      %c0_31 = arith.constant 0 : index
      %40 = vector.load %arg9[%c0_30, %c0_31] : memref<32x128xf32, #tpu.memory_space<vmem>>, vector<32x128xf32>
      %41 = vector.shape_cast %40 : vector<32x128xf32> to vector<1x32x128xf32>
      %cst_32 = arith.constant dense<0.000000e+00> : vector<1xf32>
      %42 = vector.multi_reduction <add>, %41, %cst_32 [1, 2] : vector<1x32x128xf32> to vector<1xf32>
      %43 = vector.shape_cast %42 : vector<1xf32> to vector<1x1x1xf32>
      %44 = vector.extract %43[0, 0, 0] : f32 from vector<1x1x1xf32>
      %45 = vector.broadcast %44 : f32 to vector<1x1xf32>
      %c0_33 = arith.constant 0 : index
      %c0_34 = arith.constant 0 : index
      %46 = vector.load %arg6[%c0_33, %c0_34] : memref<1x1xf32, #tpu.memory_space<vmem>>, vector<1x1xf32>
      tpu.vector_store %arg6[%c0_33, %c0_34], %45 {strides = array<i32>} : memref<1x1xf32, #tpu.memory_space<vmem>>, vector<1x1xf32>,
    } else {
    }
    return
  }
  func.func @transform_0(%arg0: i32, %arg1: i32) -> (i32, i32) {
    %c1_i32 = arith.constant 1 : i32
    %0 = arith.muli %arg0, %c1_i32 : i32
    %1 = arith.addi %0, %arg1 : i32
    %c0_i32 = arith.constant 0 : i32
    %c0_i32_0 = arith.constant 0 : i32
    return %1, %c0_i32 : i32, i32
  }
  func.func @transform_1(%arg0: i32, %arg1: i32) -> (i32, i32) {
    %c1_i32 = arith.constant 1 : i32
    %0 = arith.muli %arg0, %c1_i32 : i32
    %1 = arith.addi %0, %arg1 : i32
    %c0_i32 = arith.constant 0 : i32
    %c0_i32_0 = arith.constant 0 : i32
    return %1, %c0_i32 : i32, i32
  }
  func.func @transform_2(%arg0: i32, %arg1: i32) -> (i32, i32) {
    %c0_i32 = arith.constant 0 : i32
    %c0_i32_0 = arith.constant 0 : i32
    return %arg0, %c0_i32 : i32, i32
  }
  func.func @transform_3(%arg0: i32, %arg1: i32) -> (i32, i32) {
    %c0_i32 = arith.constant 0 : i32
    %c0_i32_0 = arith.constant 0 : i32
    return %arg0, %c0_i32 : i32, i32
  }
  func.func @transform_4(%arg0: i32, %arg1: i32) -> (i32, i32) {
    %c0_i32 = arith.constant 0 : i32
    %c0_i32_0 = arith.constant 0 : i32
    return %arg0, %c0_i32 : i32, i32
  }
}

</mosaic_0001>

<llo_original>
// kernel: tpu_custom_call.1
$region0: #{tpu_custom_call.1}
  #allocation0 [shape = 'u32[]', space=smem, size = 0x4, offset = 0x4, fixed_abs, tag = 'smem constant byte address 0x4 - core index']
  #allocation1 [shape = 'u32[144,128]{1,0:T(1,128)}', space=vmem, size = 0x12000, scoped, tag = 'internal scratch']
  #allocation2 [shape = 'f32[32,128]{1,0:T(8,128)}', space=vmem, size = 0x4000, scoped, tag = 'scratch operand']
  #allocation3 [shape = 'f32[32,128]{1,0:T(8,128)}', space=vmem, size = 0x4000, scoped, tag = 'scratch operand']
  #allocation4 [shape = 'f32[32,128]{1,0:T(8,128)}', space=vmem, size = 0x4000, scoped, tag = 'scratch operand']
  %s0 = inlined_call_operand.hbm [shape: f32[32,128], index: 0, kind: input, shape index: {}]
  %s1 = inlined_call_operand.hbm [shape: f32[32,128], index: 1, kind: input, shape index: {}]
  %s2 = inlined_call_operand.hbm [shape: f32[1,1], index: 2, kind: output, shape index: {0}]
  %s3 = inlined_call_operand.hbm [shape: f32[1,1], index: 3, kind: output, shape index: {1}]
  %s4 = inlined_call_operand.hbm [shape: f32[1,1], index: 4, kind: output, shape index: {2}]
  %5 = xla_tuple %s2, %s3, %s4
  %s6 = sld [smem:[#allocation0]]
  $region50: #{tpu_custom_call.1} parent=0
    _
  %s8 = ssub.s32 1, %s6
  %s9 = scalar_select 0, %s8, %s6
  $region1: #{tpu_custom_call.1} parent=0
    #allocation5 [shape = 'u8[16384]{0}', space=vmem, size = 0x4000, scoped, tag = 'input window, operand 0, single buffered']
    #allocation6 [shape = 's32[1]{0}', space=sflag, size = 0x4, scoped, tag = 'scoped memory for tpu_custom_call.1']
    #allocation7 [shape = 's32[1]{0}', space=sflag, size = 0x4, scoped, tag = 'scoped memory for tpu_custom_call.1']
    #allocation8 [shape = 'u8[16384]{0}', space=vmem, size = 0x4000, scoped, tag = 'input window, operand 1, single buffered']
    #allocation9 [shape = 's32[1]{0}', space=sflag, size = 0x4, scoped, tag = 'scoped memory for tpu_custom_call.1']
    #allocation10 [shape = 'u8[512]{0}', space=vmem, size = 0x400, scoped, tag = 'output window, operand 0, single buffered']
    #allocation11 [shape = 'u8[512]{0}', space=vmem, size = 0x400, scoped, tag = 'output window, operand 1, single buffered']
    #allocation12 [shape = 's32[1]{0}', space=sflag, size = 0x4, scoped, tag = 'scoped memory for tpu_custom_call.1']
    #allocation13 [shape = 'u8[512]{0}', space=vmem, size = 0x400, scoped, tag = 'output window, operand 2, single buffered']
    %10 = vsyncpa [#allocation6], 0
    %11 = vsyncpa [#allocation9], 0
    %12 = vsyncpa [#allocation7], 0
    %13 = vsyncpa [#allocation12], 0
    // Predicated region
    $region2: #{tpu_custom_call.1} parent=1 // pred_check
      _
    $region3: #{tpu_custom_call.1} parent=1 // pred_check_branch
      %15 = sbr.rel (0) target = $region5
    $region4: #{tpu_custom_call.1} parent=1 // pred_region
      %s16 = sadd.s32 0, 0
      %s17 = smul.u32 4, %s16
      %s19 = ssub.s32 512, 512
      %20 = vsyncadd [#allocation6], %s19
      %s21 = smul.addr %s17, 128
      %s22 = scalar_lea.hbm %s0, %s21
      %s23 = sshll.u32 [#allocation5], 4
      %s24 = int_to_ptr.vmem [resolvable:$true] %s23
      %29 = dma.hbm_to_vmem [thread:$0]  %s22, 512, %s24, [#allocation6], 128, 128, 8
    $region5: #{tpu_custom_call.1} parent=1 // pred_fallthru
      _
    // Predicated region
    $region6: #{tpu_custom_call.1} parent=1 // pred_check
      _
    $region7: #{tpu_custom_call.1} parent=1 // pred_check_branch
      %31 = sbr.rel (0) target = $region9
    $region8: #{tpu_custom_call.1} parent=1 // pred_region
      %s32 = sadd.s32 0, 0
      %s33 = smul.u32 4, %s32
      %s35 = ssub.s32 512, 512
      %36 = vsyncadd [#allocation9], %s35
      %s37 = smul.addr %s33, 128
      %s38 = scalar_lea.hbm %s1, %s37
      %s39 = sshll.u32 [#allocation8], 4
      %s40 = int_to_ptr.vmem [resolvable:$true] %s39
      %45 = dma.hbm_to_vmem [thread:$0]  %s38, 512, %s40, [#allocation9], 128, 128, 8
    $region9: #{tpu_custom_call.1} parent=1 // pred_fallthru
      _
    // Predicated region
    $region10: #{tpu_custom_call.1} parent=1 // pred_check
      _
    $region11: #{tpu_custom_call.1} parent=1 // pred_check_branch
      %47 = sbr.rel (0) target = $region13
    $region12: #{tpu_custom_call.1} parent=1 // pred_region
      %48 = dma.done [#allocation6], 512
    $region13: #{tpu_custom_call.1} parent=1 // pred_fallthru
      _
    // Predicated region
    $region14: #{tpu_custom_call.1} parent=1 // pred_check
      _
    $region15: #{tpu_custom_call.1} parent=1 // pred_check_branch
      %50 = sbr.rel (0) target = $region17
    $region16: #{tpu_custom_call.1} parent=1 // pred_region
      %51 = dma.done [#allocation9], 512
    $region17: #{tpu_custom_call.1} parent=1 // pred_fallthru
      _
    %s52 = sadd.s32 0, 0
    %s53 = smul.u32 4, %s52
    %s54 = sadd.s32 0, 0
    %s55 = smul.u32 4, %s54
    %p56 = scmp.eq.s32.totalorder 0, 0
    // Predicated region
    $region18: #{tpu_custom_call.1} parent=1 // pred_check
      %p57 = pneg %p56
    $region19: #{tpu_custom_call.1} parent=1 // pred_check_branch
      %59 = sbr.rel (%p57) target = $region21
    $region20: #{tpu_custom_call.1} parent=1 // pred_region
      %60 = vst [vmem:[#allocation2] sm:$0xff] 0.0
      %61 = vst [vmem:[#allocation2 + $0x8] sm:$0xff] 0.0
      %62 = vst [vmem:[#allocation2 + $0x10] sm:$0xff] 0.0
      %63 = vst [vmem:[#allocation2 + $0x18] sm:$0xff] 0.0
      %64 = vst [vmem:[#allocation3] sm:$0xff] 0.0
      %65 = vst [vmem:[#allocation3 + $0x8] sm:$0xff] 0.0
      %66 = vst [vmem:[#allocation3 + $0x10] sm:$0xff] 0.0
      %67 = vst [vmem:[#allocation3 + $0x18] sm:$0xff] 0.0
      %68 = vst [vmem:[#allocation4] sm:$0xff] 0.0
      %69 = vst [vmem:[#allocation4 + $0x8] sm:$0xff] 0.0
      %70 = vst [vmem:[#allocation4 + $0x10] sm:$0xff] 0.0
      %71 = vst [vmem:[#allocation4 + $0x18] sm:$0xff] 0.0
    $region21: #{tpu_custom_call.1} parent=1 // pred_fallthru
      _
    %v72 = vld [vmem:[#allocation5] sm:$0xff]
    %v73 = vld [vmem:[#allocation5 + $0x8] sm:$0xff]
    %v74 = vld [vmem:[#allocation5 + $0x10] sm:$0xff]
    %v75 = vld [vmem:[#allocation5 + $0x18] sm:$0xff]
    %v76 = vld [vmem:[#allocation8] sm:$0xff]
    %v77 = vld [vmem:[#allocation8 + $0x8] sm:$0xff]
    %v78 = vld [vmem:[#allocation8 + $0x10] sm:$0xff]
    %v79 = vld [vmem:[#allocation8 + $0x18] sm:$0xff]
    %vm80 = vcmp.gt.f32.partialorder %v76, 0.5
    %vm81 = vcmp.gt.f32.partialorder %v77, 0.5
    %vm82 = vcmp.gt.f32.partialorder %v78, 0.5
    %vm83 = vcmp.gt.f32.partialorder %v79, 0.5
    %v84 = vsub.f32 1.0, %v72
    %v85 = vsub.f32 1.0, %v73
    %v86 = vsub.f32 1.0, %v74
    %v87 = vsub.f32 1.0, %v75
    %v88 = vsel %vm80, %v72, %v84
    %v89 = vsel %vm81, %v73, %v85
    %v90 = vsel %vm82, %v74, %v86
    %v91 = vsel %vm83, %v75, %v87
    %v92 = vadd.f32 %v88, 1e-12
    %v93 = vadd.f32 %v89, 1e-12
    %v94 = vadd.f32 %v90, 1e-12
    %v95 = vadd.f32 %v91, 1e-12
    %v96 = vlog2.pop %v92
    %v97 = vmul.f32 %v96, 0.6931472
    %v98 = vlog2.pop %v93
    %v99 = vmul.f32 %v98, 0.6931472
    %v100 = vlog2.pop %v94
    %v101 = vmul.f32 %v100, 0.6931472
    %v102 = vlog2.pop %v95
    %v103 = vmul.f32 %v102, 0.6931472
    %v104 = vld [vmem:[#allocation2] sm:$0xff]
    %v105 = vld [vmem:[#allocation2 + $0x8] sm:$0xff]
    %v106 = vld [vmem:[#allocation2 + $0x10] sm:$0xff]
    %v107 = vld [vmem:[#allocation2 + $0x18] sm:$0xff]
    %v108 = vadd.f32 %v104, %v76
    %v109 = vadd.f32 %v105, %v77
    %v110 = vadd.f32 %v106, %v78
    %v111 = vadd.f32 %v107, %v79
    %112 = vst [vmem:[#allocation2] sm:$0xff] %v108
    %113 = vst [vmem:[#allocation2 + $0x8] sm:$0xff] %v109
    %114 = vst [vmem:[#allocation2 + $0x10] sm:$0xff] %v110
    %115 = vst [vmem:[#allocation2 + $0x18] sm:$0xff] %v111
    %v116 = vld [vmem:[#allocation3] sm:$0xff]
    %v117 = vld [vmem:[#allocation3 + $0x8] sm:$0xff]
    %v118 = vld [vmem:[#allocation3 + $0x10] sm:$0xff]
    %v119 = vld [vmem:[#allocation3 + $0x18] sm:$0xff]
    %v120 = vmul.f32 %v76, %v97
    %v121 = vmul.f32 %v77, %v99
    %v122 = vmul.f32 %v78, %v101
    %v123 = vmul.f32 %v79, %v103
    %v124 = vadd.f32 %v116, %v120
    %v125 = vadd.f32 %v117, %v121
    %v126 = vadd.f32 %v118, %v122
    %v127 = vadd.f32 %v119, %v123
    %128 = vst [vmem:[#allocation3] sm:$0xff] %v124
    %129 = vst [vmem:[#allocation3 + $0x8] sm:$0xff] %v125
    %130 = vst [vmem:[#allocation3 + $0x10] sm:$0xff] %v126
    %131 = vst [vmem:[#allocation3 + $0x18] sm:$0xff] %v127
    %v132 = vld [vmem:[#allocation4] sm:$0xff]
    %v133 = vld [vmem:[#allocation4 + $0x8] sm:$0xff]
    %v134 = vld [vmem:[#allocation4 + $0x10] sm:$0xff]
    %v135 = vld [vmem:[#allocation4 + $0x18] sm:$0xff]
    %v136 = vadd.f32 %v132, %v97
    %v137 = vadd.f32 %v133, %v99
    %v138 = vadd.f32 %v134, %v101
    %v139 = vadd.f32 %v135, %v103
    %140 = vst [vmem:[#allocation4] sm:$0xff] %v136
    %141 = vst [vmem:[#allocation4 + $0x8] sm:$0xff] %v137
    %142 = vst [vmem:[#allocation4 + $0x10] sm:$0xff] %v138
    %143 = vst [vmem:[#allocation4 + $0x18] sm:$0xff] %v139
    // Predicated region
    $region22: #{tpu_custom_call.1} parent=1 // pred_check
      %p144 = pneg %p56
    $region23: #{tpu_custom_call.1} parent=1 // pred_check_branch
      %146 = sbr.rel (%p144) target = $region25
    $region24: #{tpu_custom_call.1} parent=1 // pred_region
      %v147 = vld [vmem:[#allocation2] sm:$0xff]
      %v148 = vld [vmem:[#allocation2 + $0x8] sm:$0xff]
      %v149 = vld [vmem:[#allocation2 + $0x10] sm:$0xff]
      %v150 = vld [vmem:[#allocation2 + $0x18] sm:$0xff]
      %v151 = vadd.f32 %v147, %v148
      %v152 = vadd.f32 %v151, %v149
      %v153 = vadd.f32 %v152, %v150
      %154 = vadd.xlane.f32.xlu0 %v153
      %v155 = vpop.xlane.xlu0 %154
      %v156 = vrot.slane %v155, 4
      %v157 = vadd.f32 %v155, %v156
      %v158 = vrot.slane %v157, 2
      %v159 = vadd.f32 %v157, %v158
      %v160 = vrot.slane %v159, 1
      %v161 = vadd.f32 %v159, %v160
      %s162 = vtos %v161
      %v163 = vstv %s162
      %vm164 = vcmask 0
      %165 = vst.msk [vmem:[#allocation10] sm:$0x1] %vm164, %v163
      %v166 = vld [vmem:[#allocation3] sm:$0xff]
      %v167 = vld [vmem:[#allocation3 + $0x8] sm:$0xff]
      %v168 = vld [vmem:[#allocation3 + $0x10] sm:$0xff]
      %v169 = vld [vmem:[#allocation3 + $0x18] sm:$0xff]
      %v170 = vadd.f32 %v166, %v167
      %v171 = vadd.f32 %v170, %v168
      %v172 = vadd.f32 %v171, %v169
      %173 = vadd.xlane.f32.xlu0 %v172
      %v174 = vpop.xlane.xlu0 %173
      %v175 = vrot.slane %v174, 4
      %v176 = vadd.f32 %v174, %v175
      %v177 = vrot.slane %v176, 2
      %v178 = vadd.f32 %v176, %v177
      %v179 = vrot.slane %v178, 1
      %v180 = vadd.f32 %v178, %v179
      %s181 = vtos %v180
      %v182 = vstv %s181
      %183 = vst.msk [vmem:[#allocation11] sm:$0x1] %vm164, %v182
      %v184 = vld [vmem:[#allocation4] sm:$0xff]
      %v185 = vld [vmem:[#allocation4 + $0x8] sm:$0xff]
      %v186 = vld [vmem:[#allocation4 + $0x10] sm:$0xff]
      %v187 = vld [vmem:[#allocation4 + $0x18] sm:$0xff]
      %v188 = vadd.f32 %v184, %v185
      %v189 = vadd.f32 %v188, %v186
      %v190 = vadd.f32 %v189, %v187
      %191 = vadd.xlane.f32.xlu0 %v190
      %v192 = vpop.xlane.xlu0 %191
      %v193 = vrot.slane %v192, 4
      %v194 = vadd.f32 %v192, %v193
      %v195 = vrot.slane %v194, 2
      %v196 = vadd.f32 %v194, %v195
      %v197 = vrot.slane %v196, 1
      %v198 = vadd.f32 %v196, %v197
      %s199 = vtos %v198
      %v200 = vstv %s199
      %201 = vst.msk [vmem:[#allocation13] sm:$0x1] %vm164, %v200
    $region25: #{tpu_custom_call.1} parent=1 // pred_fallthru
      _
    // Predicated region
    $region26: #{tpu_custom_call.1} parent=1 // pred_check
      _
    $region27: #{tpu_custom_call.1} parent=1 // pred_check_branch
      %203 = sbr.rel (0) target = $region29
    $region28: #{tpu_custom_call.1} parent=1 // pred_region
      %s205 = ssub.s32 16, 16
      %206 = vsyncadd [#allocation7], %s205
      %s208 = sshll.u32 [#allocation10], 4
      %s209 = int_to_ptr.vmem [resolvable:$true] %s208
      %211 = dma.vmem_to_hbm [thread:$0]  %s209, 16, %s2, [#allocation7]
    $region29: #{tpu_custom_call.1} parent=1 // pred_fallthru
      _
    // Predicated region
    $region30: #{tpu_custom_call.1} parent=1 // pred_check
      _
    $region31: #{tpu_custom_call.1} parent=1 // pred_check_branch
      %213 = sbr.rel (0) target = $region33
    $region32: #{tpu_custom_call.1} parent=1 // pred_region
      %s215 = ssub.s32 16, 16
      %216 = vsyncadd [#allocation12], %s215
      %s218 = sshll.u32 [#allocation11], 4
      %s219 = int_to_ptr.vmem [resolvable:$true] %s218
      %221 = dma.vmem_to_hbm [thread:$0]  %s219, 16, %s3, [#allocation12]
    $region33: #{tpu_custom_call.1} parent=1 // pred_fallthru
      _
    // Predicated region
    $region34: #{tpu_custom_call.1} parent=1 // pred_check
      _
    $region35: #{tpu_custom_call.1} parent=1 // pred_check_branch
      %223 = sbr.rel (0) target = $region37
    $region36: #{tpu_custom_call.1} parent=1 // pred_region
      %s225 = ssub.s32 16, 16
      %226 = vsyncadd [#allocation12], %s225
      %s228 = sshll.u32 [#allocation13], 4
      %s229 = int_to_ptr.vmem [resolvable:$true] %s228
      %231 = dma.vmem_to_hbm [thread:$0]  %s229, 16, %s4, [#allocation12]
    $region37: #{tpu_custom_call.1} parent=1 // pred_fallthru
      _
    // Predicated region
    $region38: #{tpu_custom_call.1} parent=1 // pred_check
      _
    $region39: #{tpu_custom_call.1} parent=1 // pred_check_branch
      %233 = sbr.rel (0) target = $region41
    $region40: #{tpu_custom_call.1} parent=1 // pred_region
      %234 = dma.done [#allocation7], 16
    $region41: #{tpu_custom_call.1} parent=1 // pred_fallthru
      _
    // Predicated region
    $region42: #{tpu_custom_call.1} parent=1 // pred_check
      _
    $region43: #{tpu_custom_call.1} parent=1 // pred_check_branch
      %236 = sbr.rel (0) target = $region45
    $region44: #{tpu_custom_call.1} parent=1 // pred_region
      %237 = dma.done [#allocation12], 16
    $region45: #{tpu_custom_call.1} parent=1 // pred_fallthru
      _
    // Predicated region
    $region46: #{tpu_custom_call.1} parent=1 // pred_check
      _
    $region47: #{tpu_custom_call.1} parent=1 // pred_check_branch
      %239 = sbr.rel (0) target = $region49
    $region48: #{tpu_custom_call.1} parent=1 // pred_region
      %240 = dma.done [#allocation12], 16
    $region49: #{tpu_custom_call.1} parent=1 // pred_fallthru
      _
    %241 = vsyncpa [#allocation6], 1
    %242 = vsyncpa [#allocation9], 1
    %243 = vsyncpa [#allocation7], 1
    %244 = vsyncpa [#allocation12], 1

</llo_original>
